<compile_context>
chip_gen: v5e
topology: v5e:2x2
jax: 0.10.0
libtpu: 0.0.40
codegen_flags: <defaults>
</compile_context>

<pallas_src>
import functools

import jax
import jax.numpy as jnp
from jax import lax
from jax.experimental import pallas as pl
from jax.experimental.pallas import tpu as pltpu


def _cosine_sim_kernel(x1_ref, x2_ref, o_ref, *, eps: float):
    # Upcast inside the kernel so low-precision inputs stay small in HBM
    # (the kernel is HBM-bandwidth-bound) while reductions accumulate in f32.
    x1 = x1_ref[...].astype(jnp.float32)
    x2 = x2_ref[...].astype(jnp.float32)

    dot = jnp.sum(x1 * x2, axis=1, keepdims=True)    # (TB, 1)
    n1sq = jnp.sum(x1 * x1, axis=1, keepdims=True)   # (TB, 1)
    n2sq = jnp.sum(x2 * x2, axis=1, keepdims=True)   # (TB, 1)

    # One rsqrt (EUP slot) instead of two sqrt + one divide. eps is squared so
    # the clamp threshold matches max(||x1|| * ||x2||, eps).
    denom_sq = jnp.maximum(n1sq * n2sq, eps * eps)
    o_ref[...] = dot * lax.rsqrt(denom_sq)


def cosine_similarity(x1: jax.Array, x2: jax.Array, eps: float = 1e-8,
                      block_rows: int | None = None) -> jax.Array:
    """Cosine similarity along axis 1 for (batch, feature) inputs -> (batch,)."""
    assert x1.shape == x2.shape and x1.ndim == 2
    B, D = x1.shape
    itemsize = max(jnp.dtype(x1.dtype).itemsize, jnp.dtype(x2.dtype).itemsize)

    if block_rows is None:
        # Size (TB, D) input tiles so 2 inputs x 2 pipeline buffers total ~16 MiB.
        budget_bytes = 16 * 1024 * 1024
        tb = budget_bytes // (4 * D * itemsize)
        tb = max(8, min(1024, (tb // 8) * 8))
    else:
        tb = block_rows
    if tb >= B:
        tb = B  # single tile; a block equal to the full dim is always legal
    # TODO(synk): for very large D (an (8, D) tile no longer fits VMEM) add a second
    # "arbitrary" grid axis over D with running (dot, sumsq1, sumsq2) accumulators.

    grid = (pl.cdiv(B, tb),)

    out = pl.pallas_call(
        functools.partial(_cosine_sim_kernel, eps=eps),
        out_shape=jax.ShapeDtypeStruct((B, 1), jnp.float32),
        grid_spec=pltpu.PrefetchScalarGridSpec(
            num_scalar_prefetch=0,
            grid=grid,
            in_specs=[
                pl.BlockSpec((tb, D), lambda i: (i, 0)),
                pl.BlockSpec((tb, D), lambda i: (i, 0)),
            ],
            out_specs=pl.BlockSpec((tb, 1), lambda i: (i, 0)),
        ),
        compiler_params=pltpu.CompilerParams(
            # Row tiles are independent -> shard across both TCs on v7x.
            dimension_semantics=("parallel",),
            # Above v5e's 16 MiB scoped default, well under v7x's 64 MiB physical.
            vmem_limit_bytes=32 << 20,
        ),
    )(x1, x2)

    return out[:, 0]  # (B,)


def _ref_cosine_similarity(x1, x2, eps=1e-8):
    x1 = x1.astype(jnp.float32)
    x2 = x2.astype(jnp.float32)
    dot = jnp.sum(x1 * x2, axis=1)
    denom = jnp.maximum(
        jnp.linalg.norm(x1, axis=1) * jnp.linalg.norm(x2, axis=1), eps
    )
    return dot / denom


if __name__ == "__main__":
    key = jax.random.PRNGKey(0)
    k1, k2, k3, k4 = jax.random.split(key, 4)

    # Test 1: small f32 case (matches the SimSiam usage: (batch, feature) along dim=1).
    B, D = 8, 32
    x1 = jax.random.normal(k1, (B, D), dtype=jnp.float32)
    x2 = jax.random.normal(k2, (B, D), dtype=jnp.float32)
    out = jax.block_until_ready(cosine_similarity(x1, x2))
    ref = _ref_cosine_similarity(x1, x2)
    assert out.shape == (B,)
    assert jnp.allclose(out, ref, atol=2e-5, rtol=1e-4)

    # Test 2: multi-tile grid with a partial last block (exercises pipelining path).
    B2, D2 = 36, 128
    y1 = jax.random.normal(k3, (B2, D2), dtype=jnp.float32)
    y2 = jax.random.normal(k4, (B2, D2), dtype=jnp.float32)
    out2 = jax.block_until_ready(cosine_similarity(y1, y2, block_rows=16))
    ref2 = _ref_cosine_similarity(y1, y2)
    assert out2.shape == (B2,)
    assert jnp.allclose(out2, ref2, atol=2e-5, rtol=1e-4)

    # Test 3: bf16 inputs stay bf16 in HBM; accumulation is f32 in-kernel.
    z1 = x1.astype(jnp.bfloat16)
    z2 = x2.astype(jnp.bfloat16)
    out3 = jax.block_until_ready(cosine_similarity(z1, z2))
    ref3 = _ref_cosine_similarity(z1, z2)
    assert jnp.allclose(out3, ref3, atol=1e-3, rtol=1e-3)

    print("KERNEL_OK")
</pallas_src>

<mosaic_0001>
module attributes {stable_mosaic.version = 11 : i64} {
  func.func @_cosine_sim_kernel(%arg0: i32, %arg1: memref<8x32xf32, #tpu.memory_space<vmem>>, %arg2: memref<8x32xf32, #tpu.memory_space<vmem>>, %arg3: memref<8x1xf32, #tpu.memory_space<vmem>>) attributes {dimension_semantics = [#tpu.dimension_semantics<parallel>], iteration_bounds = array<i64: 1>, scalar_prefetch = 0 : i64, scratch_operands = 0 : i64, tpu.core_type = #tpu.core_type<tc>, window_params = [{transform_indices = @transform_0, window_bounds = array<i64: 8, 32>}, {transform_indices = @transform_1, window_bounds = array<i64: 8, 32>}, {transform_indices = @transform_2, window_bounds = array<i64: 8, 1>}]} {
    %c0 = arith.constant 0 : index
    %c0_0 = arith.constant 0 : index
    %0 = vector.load %arg1[%c0, %c0_0] : memref<8x32xf32, #tpu.memory_space<vmem>>, vector<8x32xf32>
    %c0_1 = arith.constant 0 : index
    %c0_2 = arith.constant 0 : index
    %1 = vector.load %arg2[%c0_1, %c0_2] : memref<8x32xf32, #tpu.memory_space<vmem>>, vector<8x32xf32>
    %2 = arith.mulf %0, %1 : vector<8x32xf32>
    %cst = arith.constant dense<0.000000e+00> : vector<8xf32>
    %3 = vector.multi_reduction <add>, %2, %cst [1] : vector<8x32xf32> to vector<8xf32>
    %4 = vector.shape_cast %3 : vector<8xf32> to vector<8x1xf32>
    %5 = arith.mulf %0, %0 : vector<8x32xf32>
    %cst_3 = arith.constant dense<0.000000e+00> : vector<8xf32>
    %6 = vector.multi_reduction <add>, %5, %cst_3 [1] : vector<8x32xf32> to vector<8xf32>
    %7 = vector.shape_cast %6 : vector<8xf32> to vector<8x1xf32>
    %8 = arith.mulf %1, %1 : vector<8x32xf32>
    %cst_4 = arith.constant dense<0.000000e+00> : vector<8xf32>
    %9 = vector.multi_reduction <add>, %8, %cst_4 [1] : vector<8x32xf32> to vector<8xf32>
    %10 = vector.shape_cast %9 : vector<8xf32> to vector<8x1xf32>
    %11 = arith.mulf %7, %10 : vector<8x1xf32>
    %cst_5 = arith.constant 1.000000e-16 : f32
    %12 = vector.broadcast %cst_5 : f32 to vector<8x1xf32>
    %13 = arith.maximumf %11, %12 : vector<8x1xf32>
    %14 = math.rsqrt %13 : vector<8x1xf32>
    %15 = arith.mulf %4, %14 : vector<8x1xf32>
    %c0_6 = arith.constant 0 : index
    %c0_7 = arith.constant 0 : index
    %16 = vector.load %arg3[%c0_6, %c0_7] : memref<8x1xf32, #tpu.memory_space<vmem>>, vector<8x1xf32>
    tpu.vector_store %arg3[%c0_6, %c0_7], %15 {strides = array<i32>} : memref<8x1xf32, #tpu.memory_space<vmem>>, vector<8x1xf32>,
    return
  }
  func.func @transform_0(%arg0: i32) -> (i32, i32) {
    %c0_i32 = arith.constant 0 : i32
    %c0_i32_0 = arith.constant 0 : i32
    return %arg0, %c0_i32 : i32, i32
  }
  func.func @transform_1(%arg0: i32) -> (i32, i32) {
    %c0_i32 = arith.constant 0 : i32
    %c0_i32_0 = arith.constant 0 : i32
    return %arg0, %c0_i32 : i32, i32
  }
  func.func @transform_2(%arg0: i32) -> (i32, i32) {
    %c0_i32 = arith.constant 0 : i32
    %c0_i32_0 = arith.constant 0 : i32
    return %arg0, %c0_i32 : i32, i32
  }
}

</mosaic_0001>

<llo_original>
// kernel: tpu_custom_call.1
$region0: #{tpu_custom_call.1}
  #allocation0 [shape = 'u32[]', space=smem, size = 0x4, offset = 0x4, fixed_abs, tag = 'smem constant byte address 0x4 - core index']
  #allocation1 [shape = 'u32[72,128]{1,0:T(1,128)}', space=vmem, size = 0x9000, scoped, tag = 'internal scratch']
  %s0 = inlined_call_operand.hbm [shape: f32[8,32], index: 0, kind: input, shape index: {}]
  %s1 = inlined_call_operand.hbm [shape: f32[8,32], index: 1, kind: input, shape index: {}]
  %s2 = inlined_call_operand.vmem [shape: f32[8,1], index: 2, kind: output, shape index: {}]
  %s3 = sld [smem:[#allocation0]]
  $region26: #{tpu_custom_call.1} parent=0
    _
  %s5 = ssub.s32 1, %s3
  %s6 = scalar_select 0, %s5, %s3
  $region1: #{tpu_custom_call.1} parent=0
    #allocation2 [shape = 'u8[4096]{0}', space=vmem, size = 0x1000, scoped, tag = 'input window, operand 0, single buffered']
    #allocation3 [shape = 's32[1]{0}', space=sflag, size = 0x4, scoped, tag = 'scoped memory for tpu_custom_call.1']
    #allocation4 [shape = 'u8[4096]{0}', space=vmem, size = 0x1000, scoped, tag = 'input window, operand 1, single buffered']
    #allocation5 [shape = 's32[1]{0}', space=sflag, size = 0x4, scoped, tag = 'scoped memory for tpu_custom_call.1']
    %7 = vsyncpa [#allocation3], 0
    %8 = vsyncpa [#allocation5], 0
    // Predicated region
    $region2: #{tpu_custom_call.1} parent=1 // pred_check
      _
    $region3: #{tpu_custom_call.1} parent=1 // pred_check_branch
      %10 = sbr.rel (0) target = $region5
    $region4: #{tpu_custom_call.1} parent=1 // pred_region
      %12 = vsyncadd [#allocation3], 0
      %s14 = sshll.u32 %s0, 4
      %s15 = int_to_ptr.hbm [resolvable:$true] %s14
      %s16 = sshll.u32 [#allocation2], 4
      %s17 = int_to_ptr.vmem [resolvable:$true] %s16
      %19 = dma.hbm_to_vmem [thread:$0]  %s15, 128, %s17, [#allocation3]
    $region5: #{tpu_custom_call.1} parent=1 // pred_fallthru
      _
    // Predicated region
    $region6: #{tpu_custom_call.1} parent=1 // pred_check
      _
    $region7: #{tpu_custom_call.1} parent=1 // pred_check_branch
      %21 = sbr.rel (0) target = $region9
    $region8: #{tpu_custom_call.1} parent=1 // pred_region
      %23 = vsyncadd [#allocation5], 0
      %s25 = sshll.u32 %s1, 4
      %s26 = int_to_ptr.hbm [resolvable:$true] %s25
      %s27 = sshll.u32 [#allocation4], 4
      %s28 = int_to_ptr.vmem [resolvable:$true] %s27
      %30 = dma.hbm_to_vmem [thread:$0]  %s26, 128, %s28, [#allocation5]
    $region9: #{tpu_custom_call.1} parent=1 // pred_fallthru
      _
    // Predicated region
    $region10: #{tpu_custom_call.1} parent=1 // pred_check
      _
    $region11: #{tpu_custom_call.1} parent=1 // pred_check_branch
      %32 = sbr.rel (0) target = $region13
    $region12: #{tpu_custom_call.1} parent=1 // pred_region
      %34 = dma.done [#allocation3], 128
    $region13: #{tpu_custom_call.1} parent=1 // pred_fallthru
      _
    // Predicated region
    $region14: #{tpu_custom_call.1} parent=1 // pred_check
      _
    $region15: #{tpu_custom_call.1} parent=1 // pred_check_branch
      %36 = sbr.rel (0) target = $region17
    $region16: #{tpu_custom_call.1} parent=1 // pred_region
      %38 = dma.done [#allocation5], 128
    $region17: #{tpu_custom_call.1} parent=1 // pred_fallthru
      _
    %v39 = vld [vmem:[#allocation2] sm:$0xff]
    %v40 = vld [vmem:[#allocation4] sm:$0xff]
    %v41 = vmul.f32 %v39, %v40
    %vm42 = vcmask 261120
    %v43 = vsel %vm42, %v41, 0.0
    %44 = vadd.xlane.f32.xlu0 %v43
    %v45 = vpop.xlane.xlu0 %44
    %v46 = vmul.f32 %v39, %v39
    %v47 = vsel %vm42, %v46, 0.0
    %48 = vadd.xlane.f32.xlu0 %v47
    %v49 = vpop.xlane.xlu0 %48
    %v50 = vmul.f32 %v40, %v40
    %v51 = vsel %vm42, %v50, 0.0
    %52 = vadd.xlane.f32.xlu0 %v51
    %v53 = vpop.xlane.xlu0 %52
    %v54 = vmul.f32 %v49, %v53
    %v55 = vmax.f32 %v54, 1e-16
    %v56 = vrsqrt.pop %v55
    %v57 = vmul.f32 %v56, %v55
    %v58 = vmul.f32 %v57, %v56
    %v59 = vmul.f32 0.5, %v58
    %v60 = vsub.f32 1.5, %v59
    %v61 = vmul.f32 %v56, %v60
    %vm62 = vweird.f32 %v55
    %vm63 = vweird.f32 %v56
    %vm64 = vmor %vm62, %vm63
    %v65 = vsel %vm64, %v56, %v61
    %v66 = vmul.f32 %v45, %v65
    %vm67 = vcmask 7168
    %68 = vst.msk [vmem:[%s2] sm:$0xff] %vm67, %v66
    // Predicated region
    $region18: #{tpu_custom_call.1} parent=1 // pred_check
      _
    $region19: #{tpu_custom_call.1} parent=1 // pred_check_branch
      %70 = sbr.rel (0) target = $region21
    $region20: #{tpu_custom_call.1} parent=1 // pred_region
      _
    $region21: #{tpu_custom_call.1} parent=1 // pred_fallthru
      _
    // Predicated region
    $region22: #{tpu_custom_call.1} parent=1 // pred_check
      _
    $region23: #{tpu_custom_call.1} parent=1 // pred_check_branch
      %72 = sbr.rel (0) target = $region25
    $region24: #{tpu_custom_call.1} parent=1 // pred_region
      _
    $region25: #{tpu_custom_call.1} parent=1 // pred_fallthru
      _
    %73 = vsyncpa [#allocation3], 1
    %74 = vsyncpa [#allocation5], 1

</llo_original>
